<compile_context>
chip_gen: v5e
topology: v5e:2x2
jax: 0.10.0
libtpu: 0.0.40
codegen_flags: <defaults>
</compile_context>

<pallas_src>
import functools

import jax
import jax.numpy as jnp
from jax.experimental import pallas as pl
from jax.experimental.pallas import tpu as pltpu

KH = KW = 3  # Conv2d kernel_size=3


def conv2d_kernel(x_ref, w_ref, b_ref, o_ref, stk_ref, *, img_w, span):
    """One image per grid step; single K=27 MXU matmul.

    x_ref:   (Cin, H*W)          flattened NCHW image (unpadded)
    w_ref:   (Cout, KH*KW*Cin)   tap-major repacked weights
    b_ref:   (Cout, 1)
    o_ref:   (Cout, H*W)         flattened NCHW output (invalid tail cropped by wrapper)
    stk_ref: (KH*KW*Cin, H*W)    VMEM scratch holding the stacked shifted tap slices
    """
    cin, hw = x_ref.shape

    # Lanes >= span are never written by the tap copies below; zero them once so
    # the (cropped) tail of the output is deterministic, not uninitialized VMEM.
    stk_ref[...] = jnp.zeros_like(stk_ref)

    x_img = x_ref[...]                                        # (Cin, H*W) dense load
    for kh in range(KH):
        for kw in range(KW):
            t = kh * KW + kw
            s = kh * img_w + kw
            # Shifted tap slice -> rows [t*Cin, (t+1)*Cin) of the stacked RHS.
            stk_ref[t * cin:(t + 1) * cin, :span] = x_img[:, s:s + span]

    # Single (Cout, 27) @ (27, H*W) matmul; accumulation stays in the MXU (f32).
    acc = jnp.dot(w_ref[...], stk_ref[...],
                  preferred_element_type=jnp.float32)         # (Cout, H*W)
    acc = acc + jnp.broadcast_to(b_ref[...], acc.shape)
    o_ref[...] = acc.astype(o_ref.dtype)                      # lane-dense store


def pack_params(w_oihw, bias):
    """One-time host-side repack (keep off the per-call hot path).

    w2[co, (kh*KW + kw)*Cin + ci] = W[co, ci, kh, kw];  b2 = bias as a column.
    """
    cout, cin, kh, kw = w_oihw.shape
    w2 = jnp.transpose(w_oihw, (0, 2, 3, 1)).reshape(cout, kh * kw * cin)
    b2 = bias.reshape(cout, 1)
    return w2, b2


@jax.jit
def conv2d_pallas(x_nchw, w2, b2):
    """Conv2d(3->6, k=3, stride=1, padding=0), matching torch.nn.Conv2d semantics."""
    n, cin, h, w = x_nchw.shape
    cout = w2.shape[0]
    oh, ow = h - KH + 1, w - KW + 1
    hw = h * w
    span = (oh - 1) * w + ow          # 222: widest tap slice any valid output reads

    x_flat = x_nchw.reshape(n, cin, hw)            # contiguous reshape, no pad

    out_flat = pl.pallas_call(
        functools.partial(conv2d_kernel, img_w=w, span=span),
        out_shape=jax.ShapeDtypeStruct((n, cout, hw), x_nchw.dtype),
        grid=(n,),
        in_specs=[
            pl.BlockSpec((None, cin, hw), lambda i: (i, 0, 0)),        # per-image
            pl.BlockSpec((cout, KH * KW * cin), lambda i: (0, 0)),     # weights
            pl.BlockSpec((cout, 1), lambda i: (0, 0)),                 # bias
        ],
        out_specs=pl.BlockSpec((None, cout, hw), lambda i: (i, 0, 0)),
        scratch_shapes=[pltpu.VMEM((KH * KW * cin, hw), jnp.float32)],
        compiler_params=pltpu.CompilerParams(
            dimension_semantics=("parallel",)),    # batch across TCs on v7x
    )(x_flat, w2, b2)

    # (N, Cout, H*W) reshapes straight to NCHW; crop the invalid tail cols/rows.
    # TODO(synk): downstream consumers that can mask the tail should take
    # out_flat directly and skip this strided-gather crop.
    return out_flat.reshape(n, cout, h, w)[:, :, :oh, :ow]


if __name__ == "__main__":
    key = jax.random.PRNGKey(0)
    kx, kw_, kb = jax.random.split(key, 3)

    # Small deterministic inputs / parameters (Conv2d(3, 6, 3) shapes).
    x = jax.random.normal(kx, (2, 3, 16, 16), dtype=jnp.float32)
    fan_in = 3 * KH * KW
    bound = 1.0 / (fan_in ** 0.5)
    weight = jax.random.uniform(kw_, (6, 3, KH, KW), jnp.float32, -bound, bound)
    bias = jax.random.uniform(kb, (6,), jnp.float32, -bound, bound)

    w2, b2 = pack_params(weight, bias)             # one-time repack, off hot path

    out = conv2d_pallas(x, w2, b2)
    out = jax.block_until_ready(out)
    assert out.shape == (2, 6, 14, 14), out.shape

    # Reference check against XLA's conv (same semantics as torch Conv2d).
    ref = jax.lax.conv_general_dilated(
        x, weight, window_strides=(1, 1), padding="VALID",
        dimension_numbers=("NCHW", "OIHW", "NCHW"),
    ) + bias[None, :, None, None]
    assert jnp.allclose(out, ref, atol=1e-4, rtol=1e-4), \
        float(jnp.max(jnp.abs(out - ref)))

    print("KERNEL_OK")
</pallas_src>

<mosaic_0001>
module attributes {stable_mosaic.version = 11 : i64} {
  func.func @conv2d_kernel(%arg0: i32, %arg1: memref<1x3x256xf32, #tpu.memory_space<vmem>>, %arg2: memref<6x27xf32, #tpu.memory_space<vmem>>, %arg3: memref<6x1xf32, #tpu.memory_space<vmem>>, %arg4: memref<1x6x256xf32, #tpu.memory_space<vmem>>, %arg5: memref<27x256xf32, #tpu.memory_space<vmem>>) attributes {dimension_semantics = [#tpu.dimension_semantics<parallel>], iteration_bounds = array<i64: 2>, scalar_prefetch = 0 : i64, scratch_operands = 1 : i64, tpu.core_type = #tpu.core_type<tc>, window_params = [{transform_indices = @transform_0, window_bounds = array<i64: 1, 3, 256>}, {pipeline_mode = #tpu.pipeline_mode<synchronous>, transform_indices = @transform_1, window_bounds = array<i64: 6, 27>}, {pipeline_mode = #tpu.pipeline_mode<synchronous>, transform_indices = @transform_2, window_bounds = array<i64: 6, 1>}, {transform_indices = @transform_3, window_bounds = array<i64: 1, 6, 256>}]} {
    %cst = arith.constant 0.000000e+00 : f32
    %0 = vector.broadcast %cst : f32 to vector<27x256xf32>
    %c0 = arith.constant 0 : index
    %c0_0 = arith.constant 0 : index
    %1 = vector.load %arg5[%c0, %c0_0] : memref<27x256xf32, #tpu.memory_space<vmem>>, vector<27x256xf32>
    tpu.vector_store %arg5[%c0, %c0_0], %0 {strides = array<i32>} : memref<27x256xf32, #tpu.memory_space<vmem>>, vector<27x256xf32>,
    %c0_1 = arith.constant 0 : index
    %c0_2 = arith.constant 0 : index
    %c0_3 = arith.constant 0 : index
    %2 = vector.load %arg1[%c0_1, %c0_2, %c0_3] : memref<1x3x256xf32, #tpu.memory_space<vmem>>, vector<1x3x256xf32>
    %3 = vector.shape_cast %2 : vector<1x3x256xf32> to vector<3x256xf32>
    %4 = vector.extract_strided_slice %3 {offsets = [0, 0], sizes = [3, 222], strides = [1, 1]} : vector<3x256xf32> to vector<3x222xf32>
    %c0_4 = arith.constant 0 : index
    %c0_5 = arith.constant 0 : index
    %5 = vector.load %arg5[%c0_4, %c0_5] : memref<27x256xf32, #tpu.memory_space<vmem>>, vector<3x222xf32>
    tpu.vector_store %arg5[%c0_4, %c0_5], %4 {strides = array<i32>} : memref<27x256xf32, #tpu.memory_space<vmem>>, vector<3x222xf32>,
    %6 = vector.extract_strided_slice %3 {offsets = [0, 1], sizes = [3, 222], strides = [1, 1]} : vector<3x256xf32> to vector<3x222xf32>
    %c3 = arith.constant 3 : index
    %c0_6 = arith.constant 0 : index
    %7 = vector.load %arg5[%c3, %c0_6] : memref<27x256xf32, #tpu.memory_space<vmem>>, vector<3x222xf32>
    tpu.vector_store %arg5[%c3, %c0_6], %6 {strides = array<i32>} : memref<27x256xf32, #tpu.memory_space<vmem>>, vector<3x222xf32>,
    %8 = vector.extract_strided_slice %3 {offsets = [0, 2], sizes = [3, 222], strides = [1, 1]} : vector<3x256xf32> to vector<3x222xf32>
    %c6 = arith.constant 6 : index
    %c0_7 = arith.constant 0 : index
    %9 = vector.load %arg5[%c6, %c0_7] : memref<27x256xf32, #tpu.memory_space<vmem>>, vector<3x222xf32>
    tpu.vector_store %arg5[%c6, %c0_7], %8 {strides = array<i32>} : memref<27x256xf32, #tpu.memory_space<vmem>>, vector<3x222xf32>,
    %10 = vector.extract_strided_slice %3 {offsets = [0, 16], sizes = [3, 222], strides = [1, 1]} : vector<3x256xf32> to vector<3x222xf32>
    %c9 = arith.constant 9 : index
    %c0_8 = arith.constant 0 : index
    %11 = vector.load %arg5[%c9, %c0_8] : memref<27x256xf32, #tpu.memory_space<vmem>>, vector<3x222xf32>
    tpu.vector_store %arg5[%c9, %c0_8], %10 {strides = array<i32>} : memref<27x256xf32, #tpu.memory_space<vmem>>, vector<3x222xf32>,
    %12 = vector.extract_strided_slice %3 {offsets = [0, 17], sizes = [3, 222], strides = [1, 1]} : vector<3x256xf32> to vector<3x222xf32>
    %c12 = arith.constant 12 : index
    %c0_9 = arith.constant 0 : index
    %13 = vector.load %arg5[%c12, %c0_9] : memref<27x256xf32, #tpu.memory_space<vmem>>, vector<3x222xf32>
    tpu.vector_store %arg5[%c12, %c0_9], %12 {strides = array<i32>} : memref<27x256xf32, #tpu.memory_space<vmem>>, vector<3x222xf32>,
    %14 = vector.extract_strided_slice %3 {offsets = [0, 18], sizes = [3, 222], strides = [1, 1]} : vector<3x256xf32> to vector<3x222xf32>
    %c15 = arith.constant 15 : index
    %c0_10 = arith.constant 0 : index
    %15 = vector.load %arg5[%c15, %c0_10] : memref<27x256xf32, #tpu.memory_space<vmem>>, vector<3x222xf32>
    tpu.vector_store %arg5[%c15, %c0_10], %14 {strides = array<i32>} : memref<27x256xf32, #tpu.memory_space<vmem>>, vector<3x222xf32>,
    %16 = vector.extract_strided_slice %3 {offsets = [0, 32], sizes = [3, 222], strides = [1, 1]} : vector<3x256xf32> to vector<3x222xf32>
    %c18 = arith.constant 18 : index
    %c0_11 = arith.constant 0 : index
    %17 = vector.load %arg5[%c18, %c0_11] : memref<27x256xf32, #tpu.memory_space<vmem>>, vector<3x222xf32>
    tpu.vector_store %arg5[%c18, %c0_11], %16 {strides = array<i32>} : memref<27x256xf32, #tpu.memory_space<vmem>>, vector<3x222xf32>,
    %18 = vector.extract_strided_slice %3 {offsets = [0, 33], sizes = [3, 222], strides = [1, 1]} : vector<3x256xf32> to vector<3x222xf32>
    %c21 = arith.constant 21 : index
    %c0_12 = arith.constant 0 : index
    %19 = vector.load %arg5[%c21, %c0_12] : memref<27x256xf32, #tpu.memory_space<vmem>>, vector<3x222xf32>
    tpu.vector_store %arg5[%c21, %c0_12], %18 {strides = array<i32>} : memref<27x256xf32, #tpu.memory_space<vmem>>, vector<3x222xf32>,
    %20 = vector.extract_strided_slice %3 {offsets = [0, 34], sizes = [3, 222], strides = [1, 1]} : vector<3x256xf32> to vector<3x222xf32>
    %c24 = arith.constant 24 : index
    %c0_13 = arith.constant 0 : index
    %21 = vector.load %arg5[%c24, %c0_13] : memref<27x256xf32, #tpu.memory_space<vmem>>, vector<3x222xf32>
    tpu.vector_store %arg5[%c24, %c0_13], %20 {strides = array<i32>} : memref<27x256xf32, #tpu.memory_space<vmem>>, vector<3x222xf32>,
    %c0_14 = arith.constant 0 : index
    %c0_15 = arith.constant 0 : index
    %22 = vector.load %arg2[%c0_14, %c0_15] : memref<6x27xf32, #tpu.memory_space<vmem>>, vector<6x27xf32>
    %c0_16 = arith.constant 0 : index
    %c0_17 = arith.constant 0 : index
    %23 = vector.load %arg5[%c0_16, %c0_17] : memref<27x256xf32, #tpu.memory_space<vmem>>, vector<27x256xf32>
    %cst_18 = arith.constant dense<0.000000e+00> : vector<6x256xf32>
    %24 = tpu.matmul %22, %23, %cst_18 {dimension_numbers = #tpu.dot_dimension_numbers<[1], [0], [0], [1], [0, 0, 1, 1], [], []>} : vector<6x27xf32>, vector<27x256xf32>, vector<6x256xf32> -> vector<6x256xf32>
    %c0_19 = arith.constant 0 : index
    %c0_20 = arith.constant 0 : index
    %25 = vector.load %arg3[%c0_19, %c0_20] : memref<6x1xf32, #tpu.memory_space<vmem>>, vector<6x1xf32>
    %26 = vector.shape_cast %25 : vector<6x1xf32> to vector<6x1xf32>
    %27 = vector.broadcast %26 : vector<6x1xf32> to vector<6x256xf32>
    %28 = arith.addf %24, %27 : vector<6x256xf32>
    %c0_21 = arith.constant 0 : index
    %c0_22 = arith.constant 0 : index
    %c0_23 = arith.constant 0 : index
    %29 = vector.load %arg4[%c0_21, %c0_22, %c0_23] : memref<1x6x256xf32, #tpu.memory_space<vmem>>, vector<1x6x256xf32>
    %30 = vector.shape_cast %29 : vector<1x6x256xf32> to vector<6x256xf32>
    %31 = vector.shape_cast %28 : vector<6x256xf32> to vector<1x6x256xf32>
    tpu.vector_store %arg4[%c0_21, %c0_22, %c0_23], %31 {strides = array<i32>} : memref<1x6x256xf32, #tpu.memory_space<vmem>>, vector<1x6x256xf32>,
    return
  }
  func.func @transform_0(%arg0: i32) -> (i32, i32, i32) {
    %c0_i32 = arith.constant 0 : i32
    %c0_i32_0 = arith.constant 0 : i32
    %c0_i32_1 = arith.constant 0 : i32
    return %arg0, %c0_i32, %c0_i32_0 : i32, i32, i32
  }
  func.func @transform_1(%arg0: i32) -> (i32, i32) {
    %c0_i32 = arith.constant 0 : i32
    %c0_i32_0 = arith.constant 0 : i32
    %c0_i32_1 = arith.constant 0 : i32
    return %c0_i32, %c0_i32_0 : i32, i32
  }
  func.func @transform_2(%arg0: i32) -> (i32, i32) {
    %c0_i32 = arith.constant 0 : i32
    %c0_i32_0 = arith.constant 0 : i32
    %c0_i32_1 = arith.constant 0 : i32
    return %c0_i32, %c0_i32_0 : i32, i32
  }
  func.func @transform_3(%arg0: i32) -> (i32, i32, i32) {
    %c0_i32 = arith.constant 0 : i32
    %c0_i32_0 = arith.constant 0 : i32
    %c0_i32_1 = arith.constant 0 : i32
    return %arg0, %c0_i32, %c0_i32_0 : i32, i32, i32
  }
}

</mosaic_0001>

<llo_original>
// kernel: conv2d_pallas.1
$region0: #{conv2d_pallas.1}
  #allocation0 [shape = 'u32[]', space=smem, size = 0x4, offset = 0x4, fixed_abs, tag = 'smem constant byte address 0x4 - core index']
  #allocation1 [shape = 'u32[72,128]{1,0:T(1,128)}', space=vmem, size = 0x9000, scoped, tag = 'internal scratch']
  #allocation2 [shape = 'f32[27,256]{1,0:T(8,128)}', space=vmem, size = 0x8000, scoped, tag = 'scratch operand']
  %s0 = inlined_call_operand.vmem [shape: f32[2,3,256], index: 0, kind: input, shape index: {}]
  %s1 = inlined_call_operand.vmem [shape: f32[6,27], index: 1, kind: input, shape index: {}]
  %s2 = inlined_call_operand.vmem [shape: f32[6,1], index: 2, kind: input, shape index: {}]
  %s3 = inlined_call_operand.vmem [shape: f32[2,6,256], index: 3, kind: output, shape index: {}]
  %s4 = sld [smem:[#allocation0]]
  $region45: #{conv2d_pallas.1} parent=0
    _
  %s6 = ssub.s32 1, %s4
  %s7 = scalar_select 0, %s6, %s4
  loop: start=0, step=1, limit=4
  $region2: #{conv2d_pallas.1} parent=0 // loop_pre_header
    _
  $region3: #{conv2d_pallas.1} parent=0 // loop_header
    %s9 = sphi 0, %s13
    %p10 = scmp.ge.s32.totalorder %s9, 4
    %s19 = sphi 0, %s21
    %s22 = sphi 0, %s19
    %s23 = sphi 0, %s22
    %s39 = sphi 0, %s23
    %s43 = sphi 0, %s43
    %s45 = sphi 0, %s43
    %s46 = sphi 0, %s45
    %s60 = sphi 0, %s46
    %s64 = sphi 0, %s64
    %s66 = sphi 0, %s64
    %s67 = sphi 0, %s66
    %s81 = sphi 0, %s67
    %s87 = sphi 0, %s89
    %s90 = sphi 0, %s87
    %s91 = sphi 0, %s90
    %s107 = sphi 0, %s91
  $region4: #{conv2d_pallas.1} parent=0 // loop_header_branch
    %12 = sbr.rel (%p10) target = $region8
  $region5: #{conv2d_pallas.1} parent=0 // loop_body
    %s14 = ssub.s32 %s9, 1
    %s15 = ssub.s32 %s9, 2
    %s16 = sadd.s32 %s9, 1
    %s17 = ssub.s32 %s9, %s16
    %p18 = scmp.eq.s32.totalorder %s17, 0
    %s20 = sadd.s32 %s19, 1
    %s21 = scalar_select %p18, %s19, %s20
    %p24 = pneg %p18
    %p25 = scmp.eq.s32.totalorder %s9, 1
    %p26 = por %p24, %p25
    %p27 = scmp.ne.s32.totalorder %s19, %s22
    %p28 = scmp.eq.s32.totalorder %s9, 0
    %p29 = por %p27, %p28
    %p30 = scmp.ne.s32.totalorder %s19, %s22
    %p31 = scmp.eq.s32.totalorder %s14, 1
    %p32 = por %p30, %p31
    %p33 = scmp.ne.s32.totalorder %s22, %s23
    %p34 = scmp.eq.s32.totalorder %s14, 0
    %p35 = por %p33, %p34
    %p36 = scmp.ne.s32.totalorder %s22, %s23
    %p37 = scmp.eq.s32.totalorder %s15, 1
    %p38 = por %p36, %p37
    %p40 = scmp.ne.s32.totalorder %s23, %s39
    %p41 = scmp.eq.s32.totalorder %s15, 0
    %p42 = por %p40, %p41
    %s44 = sadd.s32 %s43, 1
    %p47 = scmp.eq.s32.totalorder %s9, 1
    %p48 = scmp.ne.s32.totalorder %s43, %s45
    %p49 = scmp.eq.s32.totalorder %s9, 0
    %p50 = por %p48, %p49
    %p51 = scmp.ne.s32.totalorder %s43, %s45
    %p52 = scmp.eq.s32.totalorder %s14, 1
    %p53 = por %p51, %p52
    %p54 = scmp.ne.s32.totalorder %s45, %s46
    %p55 = scmp.eq.s32.totalorder %s14, 0
    %p56 = por %p54, %p55
    %p57 = scmp.ne.s32.totalorder %s45, %s46
    %p58 = scmp.eq.s32.totalorder %s15, 1
    %p59 = por %p57, %p58
    %p61 = scmp.ne.s32.totalorder %s46, %s60
    %p62 = scmp.eq.s32.totalorder %s15, 0
    %p63 = por %p61, %p62
    %s65 = sadd.s32 %s64, 1
    %p68 = scmp.eq.s32.totalorder %s9, 1
    %p69 = scmp.ne.s32.totalorder %s64, %s66
    %p70 = scmp.eq.s32.totalorder %s9, 0
    %p71 = por %p69, %p70
    %p72 = scmp.ne.s32.totalorder %s64, %s66
    %p73 = scmp.eq.s32.totalorder %s14, 1
    %p74 = por %p72, %p73
    %p75 = scmp.ne.s32.totalorder %s66, %s67
    %p76 = scmp.eq.s32.totalorder %s14, 0
    %p77 = por %p75, %p76
    %p78 = scmp.ne.s32.totalorder %s66, %s67
    %p79 = scmp.eq.s32.totalorder %s15, 1
    %p80 = por %p78, %p79
    %p82 = scmp.ne.s32.totalorder %s67, %s81
    %p83 = scmp.eq.s32.totalorder %s15, 0
    %p84 = por %p82, %p83
    %s85 = ssub.s32 %s9, %s16
    %p86 = scmp.eq.s32.totalorder %s85, 0
    %s88 = sadd.s32 %s87, 1
    %s89 = scalar_select %p86, %s87, %s88
    %p92 = pneg %p86
    %p93 = scmp.eq.s32.totalorder %s9, 1
    %p94 = por %p92, %p93
    %p95 = scmp.ne.s32.totalorder %s87, %s90
    %p96 = scmp.eq.s32.totalorder %s9, 0
    %p97 = por %p95, %p96
    %p98 = scmp.ne.s32.totalorder %s87, %s90
    %p99 = scmp.eq.s32.totalorder %s14, 1
    %p100 = por %p98, %p99
    %p101 = scmp.ne.s32.totalorder %s90, %s91
    %p102 = scmp.eq.s32.totalorder %s14, 0
    %p103 = por %p101, %p102
    %p104 = scmp.ne.s32.totalorder %s90, %s91
    %p105 = scmp.eq.s32.totalorder %s15, 1
    %p106 = por %p104, %p105
    %p108 = scmp.ne.s32.totalorder %s91, %s107
    %p109 = scmp.eq.s32.totalorder %s15, 0
    %p110 = por %p108, %p109
    %p111 = scmp.le.s32.totalorder 1, %s9
    %p112 = scmp.lt.s32.totalorder %s9, 3
    %p113 = pnand %p111, %p112
    %p114 = pneg %p113
    // Predicated region
    $region9: #{conv2d_pallas.1} parent=5 // pred_check
      _
    $region10: #{conv2d_pallas.1} parent=5 // pred_check_branch
      %116 = sbr.rel (%p113) target = $region12
    $region11: #{conv2d_pallas.1} parent=5 // pred_region
      %s117 = ssub.s32 %s9, 1
      // Predicated region
      $region13: #{conv2d_pallas.1} parent=11 // pred_check
        %p118 = pneg %p56
      $region14: #{conv2d_pallas.1} parent=11 // pred_check_branch
        %120 = sbr.rel (%p118) target = $region16
      $region15: #{conv2d_pallas.1} parent=11 // pred_region
        _
      $region16: #{conv2d_pallas.1} parent=11 // pred_fallthru
        _
      // Predicated region
      $region17: #{conv2d_pallas.1} parent=11 // pred_check
        %p121 = pneg %p77
      $region18: #{conv2d_pallas.1} parent=11 // pred_check_branch
        %123 = sbr.rel (%p121) target = $region20
      $region19: #{conv2d_pallas.1} parent=11 // pred_region
        _
      $region20: #{conv2d_pallas.1} parent=11 // pred_fallthru
        _
    $region12: #{conv2d_pallas.1} parent=5 // pred_fallthru
      _
    %p124 = scmp.lt.s32.totalorder %s9, 2
    // Predicated region
    $region21: #{conv2d_pallas.1} parent=5 // pred_check
      %p125 = pneg %p124
    $region22: #{conv2d_pallas.1} parent=5 // pred_check_branch
      %127 = sbr.rel (%p125) target = $region24
    $region23: #{conv2d_pallas.1} parent=5 // pred_region
      // Predicated region
      $region25: #{conv2d_pallas.1} parent=23 // pred_check
        %p128 = pneg %p29
      $region26: #{conv2d_pallas.1} parent=23 // pred_check_branch
        %130 = sbr.rel (%p128) target = $region28
      $region27: #{conv2d_pallas.1} parent=23 // pred_region
        %p131 = scmp.lt.s32.totalorder %s9, 1
        %s132 = scalar_select %p131, %s9, 1
        %s133 = smul.addr %s132, 2
        %s134 = smul.addr %s133, 4
        %s135 = scalar_lea.vmem %s0, %s134
      $region28: #{conv2d_pallas.1} parent=23 // pred_fallthru
        _
    $region24: #{conv2d_pallas.1} parent=5 // pred_fallthru
      _
    %p136 = scmp.le.s32.totalorder 1, %s9
    %p137 = scmp.lt.s32.totalorder %s9, 3
    %p138 = pnand %p136, %p137
    %p139 = pneg %p138
    // Predicated region
    $region29: #{conv2d_pallas.1} parent=5 // pred_check
      _
    $region30: #{conv2d_pallas.1} parent=5 // pred_check_branch
      %141 = sbr.rel (%p138) target = $region32
    $region31: #{conv2d_pallas.1} parent=5 // pred_region
      %s142 = ssub.s32 %s9, 1
      %p143 = scmp.lt.s32.totalorder %s14, 1
      %s144 = scalar_select %p143, %s14, 1
      %s145 = smul.addr %s144, 2
      %s146 = smul.addr %s145, 4
      %s147 = scalar_lea.vmem %s0, %s146
      %p148 = pneg %p35
      %p149 = pneg %p32
      %p150 = pneg %p56
      %p151 = pneg %p53
      %p152 = pneg %p77
      %p153 = pneg %p74
      %p154 = pneg %p103
      %p155 = pneg %p100
      %p156 = scmp.lt.s32.totalorder %s14, 1
      %s157 = scalar_select %p156, %s14, 1
      %s158 = smul.addr %s157, 2
      %s159 = smul.addr %s158, 8
      %s160 = scalar_lea.vmem %s3, %s159
      %p161 = scmp.lt.s32.totalorder %s14, 1
      %s162 = scalar_select %p161, %s14, 1
      %s163 = smul.addr %s162, 2
      %s164 = smul.addr %s163, 4
      %s165 = scalar_lea.vmem %s0, %s164
      %p166 = scmp.lt.s32.totalorder %s14, 1
      %s167 = scalar_select %p166, %s14, 1
      %s168 = smul.addr %s167, 2
      %s169 = smul.addr %s168, 8
      %s170 = scalar_lea.vmem %s3, %s169
      %171 = vst [vmem:[#allocation2] sm:$0xff] 0.0
      %172 = vst [vmem:[#allocation2 + $0x8] sm:$0xff] 0.0
      %173 = vst [vmem:[#allocation2 + $0x10] sm:$0xff] 0.0
      %174 = vst [vmem:[#allocation2 + $0x18] sm:$0xff] 0.0
      %175 = vst [vmem:[#allocation2 + $0x20] sm:$0xff] 0.0
      %176 = vst [vmem:[#allocation2 + $0x28] sm:$0xff] 0.0
      %177 = vst [vmem:[#allocation2 + $0x30] sm:$0x7] 0.0
      %178 = vst [vmem:[#allocation2 + $0x38] sm:$0x7] 0.0
      %v179 = vld [vmem:[%s165] sm:$0x77]
      %181 = vst [vmem:[#allocation1] ss:$2 sm:$0xff] %v179
      %v182 = vld.sshfl [vmem:[#allocation1] sm:$0xff pattern:$0x75316420]
      %v183 = vld.sshfl [vmem:[#allocation1 + $0x8] sm:$0xff pattern:$0x75316420]
      %186 = vst [vmem:[#allocation2] sm:$0x7] %v182
      %vm187 = vcmask 763904
      %188 = vst.msk [vmem:[#allocation2 + $0x8] sm:$0x7] %vm187, %v183
      %189 = vst [vmem:[#allocation1] ss:$2 sm:$0xff] %v179
      %v190 = vld.sshfl [vmem:[#allocation1] sm:$0xff pattern:$0x75316420]
      %v191 = vld.sshfl [vmem:[#allocation1 + $0x8] sm:$0xff pattern:$0x75316420]
      %v192 = vrot.slane %v190, 5
      %v193 = vrot.slane %v191, 5
      %194 = vrot.lane.b32.xlu0 %v192, 127
      %v195 = vpop.permute.xlu0 %194
      %196 = vrot.lane.b32.xlu0 %v193, 127
      %v197 = vpop.permute.xlu0 %196
      %vm198 = vcmask 1039360
      %v199 = vsel %vm198, %v195, %v197
      %202 = vst [vmem:[#allocation2] sm:$0x38] %v199
      %vm203 = vcmask 766979
      %204 = vst.msk [vmem:[#allocation2 + $0x8] sm:$0x38] %vm203, %v197
      %205 = vst [vmem:[#allocation1] ss:$2 sm:$0xff] %v179
      %v206 = vld.sshfl [vmem:[#allocation1] sm:$0xff pattern:$0x75316420]
      %v207 = vld.sshfl [vmem:[#allocation1 + $0x8] sm:$0xff pattern:$0x75316420]
      %v208 = vrot.slane %v206, 2
      %v209 = vrot.slane %v207, 2
      %210 = vrot.lane.b32.xlu0 %v208, 126
      %v211 = vpop.permute.xlu0 %210
      %212 = vrot.lane.b32.xlu0 %v209, 126
      %v213 = vpop.permute.xlu0 %212
      %vm214 = vcmask 1031168
      %v215 = vsel %vm214, %v211, %v213
      %218 = vst [vmem:[#allocation2] sm:$0xc0] %v215
      %vm219 = vcmask 769030
      %220 = vst.msk [vmem:[#allocation2 + $0x8] sm:$0xc0] %vm219, %v213
      %221 = vst [vmem:[#allocation2 + $0x10] sm:$0x1] %v215
      %vm222 = vcmask 761856
      %223 = vst.msk [vmem:[#allocation2 + $0x18] sm:$0x1] %vm222, %v213
      %224 = vst [vmem:[#allocation1] ss:$2 sm:$0xff] %v179
      %v225 = vld.sshfl [vmem:[#allocation1] sm:$0xff pattern:$0x75316420]
      %v226 = vld.sshfl [vmem:[#allocation1 + $0x8] sm:$0xff pattern:$0x75316420]
      %v227 = vrot.slane %v225, 7
      %v228 = vrot.slane %v226, 7
      %229 = vrot.lane.b32.xlu0 %v227, 112
      %v230 = vpop.permute.xlu0 %229
      %231 = vrot.lane.b32.xlu0 %v228, 112
      %v232 = vpop.permute.xlu0 %231
      %vm233 = vcmask 916480
      %v234 = vsel %vm233, %v230, %v232
      %237 = vst [vmem:[#allocation2 + $0x10] sm:$0xe] %v234
      %vm238 = vcmask 764929
      %239 = vst.msk [vmem:[#allocation2 + $0x18] sm:$0xe] %vm238, %v232
      %s240 = scalar_lea.vmem [#allocation1], 1
      %241 = vst [vmem:[%s240] ss:$2 sm:$0xff] %v179
      %v242 = vld.sshfl [vmem:[#allocation1] sm:$0xff pattern:$0x75316420]
      %v243 = vld.sshfl [vmem:[#allocation1 + $0x8] sm:$0xff pattern:$0x75316420]
      %244 = vrot.lane.b32.xlu0 %v242, 111
      %v245 = vpop.permute.xlu0 %244
      %246 = vrot.lane.b32.xlu0 %v243, 111
      %v247 = vpop.permute.xlu0 %246
      %vm248 = vcmask 908288
      %v249 = vsel %vm248, %v245, %v247
      %252 = vst [vmem:[#allocation2 + $0x10] sm:$0x70] %v249
      %vm253 = vcmask 768004
      %254 = vst.msk [vmem:[#allocation2 + $0x18] sm:$0x70] %vm253, %v247
      %255 = vst [vmem:[#allocation1] ss:$2 sm:$0xff] %v179
      %v256 = vld.sshfl [vmem:[#allocation1] sm:$0xff pattern:$0x75316420]
      %v257 = vld.sshfl [vmem:[#allocation1 + $0x8] sm:$0xff pattern:$0x75316420]
      %v258 = vrot.slane %v256, 1
      %v259 = vrot.slane %v257, 1
      %260 = vrot.lane.b32.xlu0 %v258, 110
      %v261 = vpop.permute.xlu0 %260
      %262 = vrot.lane.b32.xlu0 %v259, 110
      %v263 = vpop.permute.xlu0 %262
      %vm264 = vcmask 900096
      %v265 = vsel %vm264, %v261, %v263
      %268 = vst [vmem:[#allocation2 + $0x10] sm:$0x80] %v265
      %vm269 = vcmask 769031
      %270 = vst.msk [vmem:[#allocation2 + $0x18] sm:$0x80] %vm269, %v263
      %271 = vst [vmem:[#allocation2 + $0x20] sm:$0x3] %v265
      %vm272 = vcmask 762880
      %273 = vst.msk [vmem:[#allocation2 + $0x28] sm:$0x3] %vm272, %v263
      %274 = vst [vmem:[#allocation1] ss:$2 sm:$0xff] %v179
      %v275 = vld.sshfl [vmem:[#allocation1] sm:$0xff pattern:$0x75316420]
      %v276 = vld.sshfl [vmem:[#allocation1 + $0x8] sm:$0xff pattern:$0x75316420]
      %v277 = vrot.slane %v275, 6
      %v278 = vrot.slane %v276, 6
      %279 = vrot.lane.b32.xlu0 %v277, 96
      %v280 = vpop.permute.xlu0 %279
      %281 = vrot.lane.b32.xlu0 %v278, 96
      %v282 = vpop.permute.xlu0 %281
      %vm283 = vcmask 785408
      %v284 = vsel %vm283, %v280, %v282
      %287 = vst [vmem:[#allocation2 + $0x20] sm:$0x1c] %v284
      %vm288 = vcmask 765954
      %289 = vst.msk [vmem:[#allocation2 + $0x28] sm:$0x1c] %vm288, %v282
      %290 = vst [vmem:[#allocation1] ss:$2 sm:$0xff] %v179
      %v291 = vld.sshfl [vmem:[#allocation1] sm:$0xff pattern:$0x75316420]
      %v292 = vld.sshfl [vmem:[#allocation1 + $0x8] sm:$0xff pattern:$0x75316420]
      %v293 = vrot.slane %v291, 3
      %v294 = vrot.slane %v292, 3
      %295 = vrot.lane.b32.xlu0 %v293, 95
      %v296 = vpop.permute.xlu0 %295
      %297 = vrot.lane.b32.xlu0 %v294, 95
      %v298 = vpop.permute.xlu0 %297
      %vm299 = vcmask 777216
      %v300 = vsel %vm299, %v296, %v298
      %303 = vst [vmem:[#allocation2 + $0x20] sm:$0xe0] %v300
      %vm304 = vcmask 769029
      %305 = vst.msk [vmem:[#allocation2 + $0x28] sm:$0xe0] %vm304, %v298
      %306 = vst [vmem:[#allocation1] ss:$2 sm:$0xff] %v179
      %v307 = vld.sshfl [vmem:[#allocation1] sm:$0xff pattern:$0x75316420]
      %v308 = vld.sshfl [vmem:[#allocation1 + $0x8] sm:$0xff pattern:$0x75316420]
      %309 = vrot.lane.b32.xlu0 %v307, 94
      %v310 = vpop.permute.xlu0 %309
      %311 = vrot.lane.b32.xlu0 %v308, 94
      %v312 = vpop.permute.xlu0 %311
      %vm313 = vcmask 769024
      %v314 = vsel %vm313, %v310, %v312
      %317 = vst [vmem:[#allocation2 + $0x30] sm:$0x7] %v314
      %318 = vst.msk [vmem:[#allocation2 + $0x38] sm:$0x7] %vm187, %v312
      %v319 = vld [vmem:[%s1] sm:$0x3f]
      %v320 = vld [vmem:[#allocation2] sm:$0xff]
      %v321 = vld [vmem:[#allocation2 + $0x8] sm:$0xff]
      %v322 = vld [vmem:[#allocation2 + $0x10] sm:$0xff]
      %v323 = vld [vmem:[#allocation2 + $0x18] sm:$0xff]
      %v324 = vld [vmem:[#allocation2 + $0x20] sm:$0xff]
      %v325 = vld [vmem:[#allocation2 + $0x28] sm:$0xff]
      %v326 = vld [vmem:[#allocation2 + $0x30] sm:$0x7]
      %v327 = vld [vmem:[#allocation2 + $0x38] sm:$0x7]
      %v328 = vld [vmem:[%s2] sm:$0x3f]
      %330 = vset.pattern.permute.xlu0 0
      %331 = vperm.xlu0 %330, %v328
      %v332 = vpop.permute.xlu0 %331
      %vm334 = vcmask 220160
      %v336 = vsel %vm334, %v319, 0
      %vm338 = vcmask 1042432
      %v340 = vsel %vm338, %v326, 0
      %v343 = vsel %vm338, %v327, 0
      %345 = vmatpush.msra.mxu0 0.0
      %346 = vmatpush.msra.mxu0 0.0
      %347 = vmatpush.msra.mxu0 0.0
      %348 = vmatpush.msra.mxu0 0.0
      %349 = vmatpush.msra.mxu0 0.0
      %350 = vmatpush.msra.mxu0 0.0
      %351 = vmatpush.msra.mxu0 0.0
      %352 = vmatpush.msra.mxu0 0.0
      %353 = vmatpush.msra.mxu0 0.0
      %354 = vmatpush.msra.mxu0 0.0
      %355 = vmatpush.msra.mxu0 0.0
      %356 = vmatpush.msra.mxu0 0.0
      %357 = vmatpush.msra.mxu0 %v340
      %358 = vmatpush.msra.mxu0 %v324
      %359 = vmatpush.msra.mxu0 %v322
      %360 = vmatpush.msra.mxu0 %v320
      %361 = vmatmul.f32.gmra.mxu0 %v336
      %v362 = vpop.f32.mrf.mxu0
      %v363 = vadd.f32 %v332, %v362
      %364 = vdwg.mxu0
      %365 = vmatpush.msra.mxu0 0.0
      %366 = vmatpush.msra.mxu0 0.0
      %367 = vmatpush.msra.mxu0 0.0
      %368 = vmatpush.msra.mxu0 0.0
      %369 = vmatpush.msra.mxu0 0.0
      %370 = vmatpush.msra.mxu0 0.0
      %371 = vmatpush.msra.mxu0 0.0
      %372 = vmatpush.msra.mxu0 0.0
      %373 = vmatpush.msra.mxu0 0.0
      %374 = vmatpush.msra.mxu0 0.0
      %375 = vmatpush.msra.mxu0 0.0
      %376 = vmatpush.msra.mxu0 0.0
      %377 = vmatpush.msra.mxu0 %v343
      %378 = vmatpush.msra.mxu0 %v325
      %379 = vmatpush.msra.mxu0 %v323
      %380 = vmatpush.msra.mxu0 %v321
      %381 = vmatmul.f32.gmra.mxu0 %v336
      %v382 = vpop.f32.mrf.mxu0
      %v383 = vadd.f32 %v332, %v382
      %384 = vdwg.mxu0
      %385 = vst [vmem:[%s170] sm:$0x3f] %v363
      %386 = vst [vmem:[%s170 + $0x8] sm:$0x3f] %v383
      %p387 = scmp.lt.s32.totalorder %s14, 1
      %s388 = scalar_select %p387, %s14, 1
      %s389 = smul.addr %s388, 2
      %s390 = smul.addr %s389, 8
      %s391 = scalar_lea.vmem %s3, %s390
      // Predicated region
      $region33: #{conv2d_pallas.1} parent=31 // pred_check
        %p392 = pneg %p100
      $region34: #{conv2d_pallas.1} parent=31 // pred_check_branch
        %394 = sbr.rel (%p392) target = $region36
      $region35: #{conv2d_pallas.1} parent=31 // pred_region
        _
      $region36: #{conv2d_pallas.1} parent=31 // pred_fallthru
        _
    $region32: #{conv2d_pallas.1} parent=5 // pred_fallthru
      _
    %p395 = scmp.le.s32.totalorder 2, %s9
    // Predicated region
    $region37: #{conv2d_pallas.1} parent=5 // pred_check
      %p396 = pneg %p395
    $region38: #{conv2d_pallas.1} parent=5 // pred_check_branch
      %398 = sbr.rel (%p396) target = $region40
    $region39: #{conv2d_pallas.1} parent=5 // pred_region
      %s399 = ssub.s32 %s9, 2
      // Predicated region
      $region41: #{conv2d_pallas.1} parent=39 // pred_check
        %p400 = pneg %p106
      $region42: #{conv2d_pallas.1} parent=39 // pred_check_branch
        %402 = sbr.rel (%p400) target = $region44
      $region43: #{conv2d_pallas.1} parent=39 // pred_region
        %p403 = scmp.lt.s32.totalorder %s15, 1
        %s404 = scalar_select %p403, %s15, 1
        %s405 = smul.addr %s404, 2
        %s406 = smul.addr %s405, 8
        %s407 = scalar_lea.vmem %s3, %s406
      $region44: #{conv2d_pallas.1} parent=39 // pred_fallthru
        _
    $region40: #{conv2d_pallas.1} parent=5 // pred_fallthru
      _
  $region6: #{conv2d_pallas.1} parent=0 // loop_footer
    %s13 = sadd.s32 1, %s9
  $region7: #{conv2d_pallas.1} parent=0 // loop_footer_branch
    %8 = sbr.rel target = $region3
  $region8: #{conv2d_pallas.1} parent=0 // loop_exit
    _

</llo_original>
